<compile_context>
chip_gen: v5e
topology: v5e:2x2
jax: 0.10.0
libtpu: 0.0.40
codegen_flags: <defaults>
</compile_context>

<pallas_src>
import jax
import jax.numpy as jnp
from jax.experimental import pallas as pl
from jax.experimental.pallas import tpu as pltpu

HIDDEN = 128   # width of each branch (state_fc / action_fc)
FUSED = 256    # width of cat(action_h, state_h) == fc[0] input/output


def _round_up(x, m):
    return ((x + m - 1) // m) * m


def context_model_kernel(x_ref, w0_ref, b0_ref, w1_ref, b1_ref, w2_ref, b2_ref,
                         out_ref):
    # Fused first layer: x = cat(action, state); W0 is block-diagonal so
    # x @ W0 == [action @ Wa, state @ Ws]  (matches torch cat((a_h, s_h), 1)).
    x = x_ref[...].astype(jnp.bfloat16)
    h0 = jnp.dot(x, w0_ref[...], preferred_element_type=jnp.float32)
    h0 = jnp.maximum(h0 + b0_ref[...], 0.0)

    # fc[0]: full-depth K=256 contraction.
    h1 = jnp.dot(h0.astype(jnp.bfloat16), w1_ref[...],
                 preferred_element_type=jnp.float32)
    h1 = jnp.maximum(h1 + b1_ref[...], 0.0)

    # fc[2]: projection to (padded, lane-dense) context width; no activation.
    out = jnp.dot(h1.astype(jnp.bfloat16), w2_ref[...],
                  preferred_element_type=jnp.float32)
    out_ref[...] = (out + b2_ref[...]).astype(out_ref.dtype)


def context_model_forward(state, action, params, *, block_b=512):
    """state: (B, state_dim*history), action: (B, action_dim*history)."""
    B = state.shape[0]
    A = action.shape[1]
    S = state.shape[1]
    d_in = A + S
    ctx_dim = params["ctx_dim"]
    out_pad = params["W2"].shape[1]

    # Fused input, matching torch's cat((action_h, state_h), 1) ordering.
    x = jnp.concatenate([action, state], axis=1).astype(jnp.float32)

    # Pick a batch tile: <=512 rows, 8-row aligned; pad batch so it divides.
    bp = _round_up(B, 8)
    tb = min(block_b, bp)
    bp = _round_up(bp, tb)
    if bp != B:
        x = jnp.pad(x, ((0, bp - B), (0, 0)))

    grid = (bp // tb,)

    flops = 2 * bp * (d_in * FUSED + FUSED * FUSED + FUSED * out_pad)
    bytes_accessed = (
        bp * d_in * 4                                   # activations in
        + (params["W0"].size + params["W1"].size + params["W2"].size) * 2
        + (params["b0"].size + params["b1"].size + params["b2"].size) * 4
        + bp * out_pad * 4                              # output
    )

    out = pl.pallas_call(
        context_model_kernel,
        out_shape=jax.ShapeDtypeStruct((bp, out_pad), jnp.float32),
        grid=grid,
        in_specs=[
            pl.BlockSpec((tb, d_in), lambda i: (i, 0)),        # x tile
            pl.BlockSpec((d_in, FUSED), lambda i: (0, 0)),     # W0 (resident)
            pl.BlockSpec((1, FUSED), lambda i: (0, 0)),        # b0
            pl.BlockSpec((FUSED, FUSED), lambda i: (0, 0)),    # W1
            pl.BlockSpec((1, FUSED), lambda i: (0, 0)),        # b1
            pl.BlockSpec((FUSED, out_pad), lambda i: (0, 0)),  # W2 (padded)
            pl.BlockSpec((1, out_pad), lambda i: (0, 0)),      # b2
        ],
        out_specs=pl.BlockSpec((tb, out_pad), lambda i: (i, 0)),
        compiler_params=pltpu.CompilerParams(
            dimension_semantics=("parallel",),
        ),
        cost_estimate=pl.CostEstimate(
            flops=flops, transcendentals=0, bytes_accessed=bytes_accessed),
    )(x, params["W0"], params["b0"], params["W1"], params["b1"],
      params["W2"], params["b2"])

    # Undo batch padding and lane padding (cheap XLA slice).
    return out[:B, :ctx_dim]


def init_params(key, state_dim_total, action_dim_total, context_dim):
    """PyTorch nn.Linear default init (U(-1/sqrt(fan_in), +)), then pack."""
    ks = jax.random.split(key, 8)

    def linear(kw, kb, fan_in, fan_out):
        bound = 1.0 / jnp.sqrt(jnp.float32(fan_in))
        W = jax.random.uniform(kw, (fan_in, fan_out), jnp.float32, -bound, bound)
        b = jax.random.uniform(kb, (1, fan_out), jnp.float32, -bound, bound)
        return W, b

    A, S = action_dim_total, state_dim_total
    Ws, bs = linear(ks[0], ks[1], S, HIDDEN)
    Wa, ba = linear(ks[2], ks[3], A, HIDDEN)
    W1, b1 = linear(ks[4], ks[5], FUSED, FUSED)
    W2, b2 = linear(ks[6], ks[7], FUSED, context_dim)

    # Block-diagonal fused first-layer weight: rows [0:A] -> cols [0:128] (Wa),
    # rows [A:A+S] -> cols [128:256] (Ws). Input is cat(action, state).
    W0 = jnp.zeros((A + S, FUSED), jnp.float32)
    W0 = W0.at[:A, :HIDDEN].set(Wa)
    W0 = W0.at[A:, HIDDEN:].set(Ws)
    b0 = jnp.concatenate([ba, bs], axis=1)

    # Lane-dense output: pad last layer to a multiple of 128 columns.
    out_pad = max(128, _round_up(context_dim, 128))
    W2p = jnp.zeros((FUSED, out_pad), jnp.float32).at[:, :context_dim].set(W2)
    b2p = jnp.zeros((1, out_pad), jnp.float32).at[:, :context_dim].set(b2)

    return {
        # kernel operands (weights bf16, biases f32)
        "W0": W0.astype(jnp.bfloat16), "b0": b0,
        "W1": W1.astype(jnp.bfloat16), "b1": b1,
        "W2": W2p.astype(jnp.bfloat16), "b2": b2p,
        "ctx_dim": context_dim,
        # f32 originals kept for the reference check
        "ref": {"Ws": Ws, "bs": bs, "Wa": Wa, "ba": ba,
                "W1": W1, "b1": b1, "W2": W2, "b2": b2},
    }


def reference_forward(state, action, params):
    """Pure-JAX f32 reference with the exact torch structure."""
    p = params["ref"]
    ha = jax.nn.relu(action @ p["Wa"] + p["ba"])
    hs = jax.nn.relu(state @ p["Ws"] + p["bs"])
    h = jnp.concatenate([ha, hs], axis=1)
    h1 = jax.nn.relu(h @ p["W1"] + p["b1"])
    return h1 @ p["W2"] + p["b2"]


if __name__ == "__main__":
    # Small shapes consistent with the module's forward.
    state_dim, action_dim, history_length, context_dim = 8, 4, 2, 16
    S = state_dim * history_length      # 16
    A = action_dim * history_length     # 8
    B = 8                               # batch

    key = jax.random.PRNGKey(0)
    k_params, k_state, k_action = jax.random.split(key, 3)

    params = init_params(k_params, S, A, context_dim)
    state = jax.random.normal(k_state, (B, S), jnp.float32)
    action = jax.random.normal(k_action, (B, A), jnp.float32)

    out = context_model_forward(state, action, params)
    out = jax.block_until_ready(out)

    ref = reference_forward(state, action, params)
    assert out.shape == (B, context_dim)
    # bf16 matmul inputs (f32 accumulation) -> loosened tolerance vs f32 ref.
    assert jnp.allclose(out, ref, atol=3e-2, rtol=3e-2), (
        float(jnp.max(jnp.abs(out - ref))))

    print("KERNEL_OK")
</pallas_src>

<mosaic_0001>
module attributes {stable_mosaic.version = 11 : i64} {
  func.func @context_model_kernel(%arg0: i32, %arg1: memref<8x24xf32, #tpu.memory_space<vmem>>, %arg2: memref<24x256xbf16, #tpu.memory_space<vmem>>, %arg3: memref<1x256xf32, #tpu.memory_space<vmem>>, %arg4: memref<256x256xbf16, #tpu.memory_space<vmem>>, %arg5: memref<1x256xf32, #tpu.memory_space<vmem>>, %arg6: memref<256x128xbf16, #tpu.memory_space<vmem>>, %arg7: memref<1x128xf32, #tpu.memory_space<vmem>>, %arg8: memref<8x128xf32, #tpu.memory_space<vmem>>) attributes {dimension_semantics = [#tpu.dimension_semantics<parallel>], iteration_bounds = array<i64: 1>, scalar_prefetch = 0 : i64, scratch_operands = 0 : i64, tpu.core_type = #tpu.core_type<tc>, window_params = [{transform_indices = @transform_0, window_bounds = array<i64: 8, 24>}, {pipeline_mode = #tpu.pipeline_mode<synchronous>, transform_indices = @transform_1, window_bounds = array<i64: 24, 256>}, {pipeline_mode = #tpu.pipeline_mode<synchronous>, transform_indices = @transform_2, window_bounds = array<i64: 1, 256>}, {pipeline_mode = #tpu.pipeline_mode<synchronous>, transform_indices = @transform_3, window_bounds = array<i64: 256, 256>}, {pipeline_mode = #tpu.pipeline_mode<synchronous>, transform_indices = @transform_4, window_bounds = array<i64: 1, 256>}, {pipeline_mode = #tpu.pipeline_mode<synchronous>, transform_indices = @transform_5, window_bounds = array<i64: 256, 128>}, {pipeline_mode = #tpu.pipeline_mode<synchronous>, transform_indices = @transform_6, window_bounds = array<i64: 1, 128>}, {transform_indices = @transform_7, window_bounds = array<i64: 8, 128>}]} {
    %c0 = arith.constant 0 : index
    %c0_0 = arith.constant 0 : index
    %0 = vector.load %arg1[%c0, %c0_0] : memref<8x24xf32, #tpu.memory_space<vmem>>, vector<8x24xf32>
    %1 = arith.truncf %0 : vector<8x24xf32> to vector<8x24xbf16>
    %c0_1 = arith.constant 0 : index
    %c0_2 = arith.constant 0 : index
    %2 = vector.load %arg2[%c0_1, %c0_2] : memref<24x256xbf16, #tpu.memory_space<vmem>>, vector<24x256xbf16>
    %cst = arith.constant dense<0.000000e+00> : vector<8x256xf32>
    %3 = tpu.matmul %1, %2, %cst {dimension_numbers = #tpu.dot_dimension_numbers<[1], [0], [0], [1], [0, 0, 1, 1], [], []>} : vector<8x24xbf16>, vector<24x256xbf16>, vector<8x256xf32> -> vector<8x256xf32>
    %c0_3 = arith.constant 0 : index
    %c0_4 = arith.constant 0 : index
    %4 = vector.load %arg3[%c0_3, %c0_4] : memref<1x256xf32, #tpu.memory_space<vmem>>, vector<1x256xf32>
    %5 = vector.broadcast %4 : vector<1x256xf32> to vector<8x256xf32>
    %6 = arith.addf %3, %5 : vector<8x256xf32>
    %cst_5 = arith.constant 0.000000e+00 : f32
    %7 = vector.broadcast %cst_5 : f32 to vector<8x256xf32>
    %8 = arith.maximumf %6, %7 : vector<8x256xf32>
    %9 = arith.truncf %8 : vector<8x256xf32> to vector<8x256xbf16>
    %c0_6 = arith.constant 0 : index
    %c0_7 = arith.constant 0 : index
    %10 = vector.load %arg4[%c0_6, %c0_7] : memref<256x256xbf16, #tpu.memory_space<vmem>>, vector<256x256xbf16>
    %cst_8 = arith.constant dense<0.000000e+00> : vector<8x256xf32>
    %11 = tpu.matmul %9, %10, %cst_8 {dimension_numbers = #tpu.dot_dimension_numbers<[1], [0], [0], [1], [0, 0, 1, 1], [], []>} : vector<8x256xbf16>, vector<256x256xbf16>, vector<8x256xf32> -> vector<8x256xf32>
    %c0_9 = arith.constant 0 : index
    %c0_10 = arith.constant 0 : index
    %12 = vector.load %arg5[%c0_9, %c0_10] : memref<1x256xf32, #tpu.memory_space<vmem>>, vector<1x256xf32>
    %13 = vector.broadcast %12 : vector<1x256xf32> to vector<8x256xf32>
    %14 = arith.addf %11, %13 : vector<8x256xf32>
    %cst_11 = arith.constant 0.000000e+00 : f32
    %15 = vector.broadcast %cst_11 : f32 to vector<8x256xf32>
    %16 = arith.maximumf %14, %15 : vector<8x256xf32>
    %17 = arith.truncf %16 : vector<8x256xf32> to vector<8x256xbf16>
    %c0_12 = arith.constant 0 : index
    %c0_13 = arith.constant 0 : index
    %18 = vector.load %arg6[%c0_12, %c0_13] : memref<256x128xbf16, #tpu.memory_space<vmem>>, vector<256x128xbf16>
    %cst_14 = arith.constant dense<0.000000e+00> : vector<8x128xf32>
    %19 = tpu.matmul %17, %18, %cst_14 {dimension_numbers = #tpu.dot_dimension_numbers<[1], [0], [0], [1], [0, 0, 1, 1], [], []>} : vector<8x256xbf16>, vector<256x128xbf16>, vector<8x128xf32> -> vector<8x128xf32>
    %c0_15 = arith.constant 0 : index
    %c0_16 = arith.constant 0 : index
    %20 = vector.load %arg7[%c0_15, %c0_16] : memref<1x128xf32, #tpu.memory_space<vmem>>, vector<1x128xf32>
    %21 = vector.broadcast %20 : vector<1x128xf32> to vector<8x128xf32>
    %22 = arith.addf %19, %21 : vector<8x128xf32>
    %c0_17 = arith.constant 0 : index
    %c0_18 = arith.constant 0 : index
    %23 = vector.load %arg8[%c0_17, %c0_18] : memref<8x128xf32, #tpu.memory_space<vmem>>, vector<8x128xf32>
    tpu.vector_store %arg8[%c0_17, %c0_18], %22 {strides = array<i32>} : memref<8x128xf32, #tpu.memory_space<vmem>>, vector<8x128xf32>,
    return
  }
  func.func @transform_0(%arg0: i32) -> (i32, i32) {
    %c0_i32 = arith.constant 0 : i32
    %c0_i32_0 = arith.constant 0 : i32
    return %arg0, %c0_i32 : i32, i32
  }
  func.func @transform_1(%arg0: i32) -> (i32, i32) {
    %c0_i32 = arith.constant 0 : i32
    %c0_i32_0 = arith.constant 0 : i32
    %c0_i32_1 = arith.constant 0 : i32
    return %c0_i32, %c0_i32_0 : i32, i32
  }
  func.func @transform_2(%arg0: i32) -> (i32, i32) {
    %c0_i32 = arith.constant 0 : i32
    %c0_i32_0 = arith.constant 0 : i32
    %c0_i32_1 = arith.constant 0 : i32
    return %c0_i32, %c0_i32_0 : i32, i32
  }
  func.func @transform_3(%arg0: i32) -> (i32, i32) {
    %c0_i32 = arith.constant 0 : i32
    %c0_i32_0 = arith.constant 0 : i32
    %c0_i32_1 = arith.constant 0 : i32
    return %c0_i32, %c0_i32_0 : i32, i32
  }
  func.func @transform_4(%arg0: i32) -> (i32, i32) {
    %c0_i32 = arith.constant 0 : i32
    %c0_i32_0 = arith.constant 0 : i32
    %c0_i32_1 = arith.constant 0 : i32
    return %c0_i32, %c0_i32_0 : i32, i32
  }
  func.func @transform_5(%arg0: i32) -> (i32, i32) {
    %c0_i32 = arith.constant 0 : i32
    %c0_i32_0 = arith.constant 0 : i32
    %c0_i32_1 = arith.constant 0 : i32
    return %c0_i32, %c0_i32_0 : i32, i32
  }
  func.func @transform_6(%arg0: i32) -> (i32, i32) {
    %c0_i32 = arith.constant 0 : i32
    %c0_i32_0 = arith.constant 0 : i32
    %c0_i32_1 = arith.constant 0 : i32
    return %c0_i32, %c0_i32_0 : i32, i32
  }
  func.func @transform_7(%arg0: i32) -> (i32, i32) {
    %c0_i32 = arith.constant 0 : i32
    %c0_i32_0 = arith.constant 0 : i32
    return %arg0, %c0_i32 : i32, i32
  }
}

</mosaic_0001>

<llo_original>
// kernel: tpu_custom_call.1
$region0: #{tpu_custom_call.1}
  #allocation0 [shape = 'u32[]', space=smem, size = 0x4, offset = 0x4, fixed_abs, tag = 'smem constant byte address 0x4 - core index']
  #allocation1 [shape = 'u32[72,128]{1,0:T(1,128)}', space=vmem, size = 0x9000, scoped, tag = 'internal scratch']
  %s0 = inlined_call_operand.hbm [shape: f32[8,24], index: 0, kind: input, shape index: {}]
  %s1 = inlined_call_operand.hbm [shape: bf16[24,256], index: 1, kind: input, shape index: {}]
  %s2 = inlined_call_operand.hbm [shape: f32[1,256], index: 2, kind: input, shape index: {}]
  %s3 = inlined_call_operand.hbm [shape: bf16[256,256], index: 3, kind: input, shape index: {}]
  %s4 = inlined_call_operand.vmem [shape: f32[1,256], index: 4, kind: input, shape index: {}]
  %s5 = inlined_call_operand.hbm [shape: bf16[256,128], index: 5, kind: input, shape index: {}]
  %s6 = inlined_call_operand.vmem [shape: f32[1,128], index: 6, kind: input, shape index: {}]
  %s7 = inlined_call_operand.hbm [shape: f32[8,128], index: 7, kind: output, shape index: {}]
  %s8 = sld [smem:[#allocation0]]
  $region58: #{tpu_custom_call.1} parent=0
    _
  %s10 = ssub.s32 1, %s8
  %s11 = scalar_select 0, %s10, %s8
  $region1: #{tpu_custom_call.1} parent=0
    #allocation2 [shape = 'u8[4096]{0}', space=vmem, size = 0x1000, scoped, tag = 'input window, operand 0, single buffered']
    #allocation3 [shape = 's32[1]{0}', space=sflag, size = 0x4, scoped, tag = 'scoped memory for tpu_custom_call.1']
    #allocation4 [shape = 's32[1]{0}', space=sflag, size = 0x4, scoped, tag = 'scoped memory for tpu_custom_call.1']
    #allocation5 [shape = 'u8[12288]{0}', space=vmem, size = 0x3000, scoped, tag = 'input window, operand 1, single buffered']
    #allocation6 [shape = 's32[1]{0}', space=sflag, size = 0x4, scoped, tag = 'scoped memory for tpu_custom_call.1']
    #allocation7 [shape = 'u8[1024]{0}', space=vmem, size = 0x400, scoped, tag = 'input window, operand 2, single buffered']
    #allocation8 [shape = 'u8[131072]{0}', space=vmem, size = 0x20000, scoped, tag = 'input window, operand 3, single buffered']
    #allocation9 [shape = 's32[1]{0}', space=sflag, size = 0x4, scoped, tag = 'scoped memory for tpu_custom_call.1']
    #allocation10 [shape = 'u8[65536]{0}', space=vmem, size = 0x10000, scoped, tag = 'input window, operand 5, single buffered']
    #allocation11 [shape = 'u8[4096]{0}', space=vmem, size = 0x1000, scoped, tag = 'output window, operand 0, single buffered']
    %12 = vsyncpa [#allocation3], 0
    %13 = vsyncpa [#allocation6], 0
    %14 = vsyncpa [#allocation9], 0
    %15 = vsyncpa [#allocation4], 0
    // Predicated region
    $region2: #{tpu_custom_call.1} parent=1 // pred_check
      _
    $region3: #{tpu_custom_call.1} parent=1 // pred_check_branch
      %17 = sbr.rel (0) target = $region5
    $region4: #{tpu_custom_call.1} parent=1 // pred_region
      %19 = vsyncadd [#allocation3], 0
      %s21 = sshll.u32 %s0, 4
      %s22 = int_to_ptr.hbm [resolvable:$true] %s21
      %s23 = sshll.u32 [#allocation2], 4
      %s24 = int_to_ptr.vmem [resolvable:$true] %s23
      %26 = dma.hbm_to_vmem [thread:$0]  %s22, 128, %s24, [#allocation3]
    $region5: #{tpu_custom_call.1} parent=1 // pred_fallthru
      _
    // Predicated region
    $region6: #{tpu_custom_call.1} parent=1 // pred_check
      _
    $region7: #{tpu_custom_call.1} parent=1 // pred_check_branch
      %28 = sbr.rel (0) target = $region9
    $region8: #{tpu_custom_call.1} parent=1 // pred_region
      %30 = vsyncadd [#allocation6], 0
      %s31 = sshll.u32 %s1, 4
      %s32 = int_to_ptr.hbm [resolvable:$true] %s31
      %s33 = sshll.u32 [#allocation5], 4
      %s34 = int_to_ptr.vmem [resolvable:$true] %s33
      %39 = dma.hbm_to_vmem [thread:$0]  %s32, 384, %s34, [#allocation6], 128, 128, 8
    $region9: #{tpu_custom_call.1} parent=1 // pred_fallthru
      _
    // Predicated region
    $region10: #{tpu_custom_call.1} parent=1 // pred_check
      _
    $region11: #{tpu_custom_call.1} parent=1 // pred_check_branch
      %41 = sbr.rel (0) target = $region13
    $region12: #{tpu_custom_call.1} parent=1 // pred_region
      %43 = vsyncadd [#allocation6], 0
      %s45 = sshll.u32 %s2, 4
      %s46 = int_to_ptr.hbm [resolvable:$true] %s45
      %s47 = sshll.u32 [#allocation7], 4
      %s48 = int_to_ptr.vmem [resolvable:$true] %s47
      %50 = dma.hbm_to_vmem [thread:$0]  %s46, 32, %s48, [#allocation6]
    $region13: #{tpu_custom_call.1} parent=1 // pred_fallthru
      _
    // Predicated region
    $region14: #{tpu_custom_call.1} parent=1 // pred_check
      _
    $region15: #{tpu_custom_call.1} parent=1 // pred_check_branch
      %52 = sbr.rel (0) target = $region17
    $region16: #{tpu_custom_call.1} parent=1 // pred_region
      %54 = vsyncadd [#allocation9], 0
      %s55 = sshll.u32 %s3, 4
      %s56 = int_to_ptr.hbm [resolvable:$true] %s55
      %s57 = sshll.u32 [#allocation8], 4
      %s58 = int_to_ptr.vmem [resolvable:$true] %s57
      %63 = dma.hbm_to_vmem [thread:$0]  %s56, 4096, %s58, [#allocation9], 128, 128, 8
    $region17: #{tpu_custom_call.1} parent=1 // pred_fallthru
      _
    // Predicated region
    $region18: #{tpu_custom_call.1} parent=1 // pred_check
      _
    $region19: #{tpu_custom_call.1} parent=1 // pred_check_branch
      %65 = sbr.rel (0) target = $region21
    $region20: #{tpu_custom_call.1} parent=1 // pred_region
      _
    $region21: #{tpu_custom_call.1} parent=1 // pred_fallthru
      _
    // Predicated region
    $region22: #{tpu_custom_call.1} parent=1 // pred_check
      _
    $region23: #{tpu_custom_call.1} parent=1 // pred_check_branch
      %67 = sbr.rel (0) target = $region25
    $region24: #{tpu_custom_call.1} parent=1 // pred_region
      %69 = vsyncadd [#allocation9], 0
      %s70 = sshll.u32 %s5, 4
      %s71 = int_to_ptr.hbm [resolvable:$true] %s70
      %s72 = sshll.u32 [#allocation10], 4
      %s73 = int_to_ptr.vmem [resolvable:$true] %s72
      %78 = dma.hbm_to_vmem [thread:$0]  %s71, 2048, %s73, [#allocation9], 64, 64, 4
    $region25: #{tpu_custom_call.1} parent=1 // pred_fallthru
      _
    // Predicated region
    $region26: #{tpu_custom_call.1} parent=1 // pred_check
      _
    $region27: #{tpu_custom_call.1} parent=1 // pred_check_branch
      %80 = sbr.rel (0) target = $region29
    $region28: #{tpu_custom_call.1} parent=1 // pred_region
      _
    $region29: #{tpu_custom_call.1} parent=1 // pred_fallthru
      _
    // Predicated region
    $region30: #{tpu_custom_call.1} parent=1 // pred_check
      _
    $region31: #{tpu_custom_call.1} parent=1 // pred_check_branch
      %82 = sbr.rel (0) target = $region33
    $region32: #{tpu_custom_call.1} parent=1 // pred_region
      %84 = dma.done [#allocation3], 128
    $region33: #{tpu_custom_call.1} parent=1 // pred_fallthru
      _
    // Predicated region
    $region34: #{tpu_custom_call.1} parent=1 // pred_check
      _
    $region35: #{tpu_custom_call.1} parent=1 // pred_check_branch
      %86 = sbr.rel (0) target = $region37
    $region36: #{tpu_custom_call.1} parent=1 // pred_region
      %88 = dma.done [#allocation6], 384
    $region37: #{tpu_custom_call.1} parent=1 // pred_fallthru
      _
    // Predicated region
    $region38: #{tpu_custom_call.1} parent=1 // pred_check
      _
    $region39: #{tpu_custom_call.1} parent=1 // pred_check_branch
      %90 = sbr.rel (0) target = $region41
    $region40: #{tpu_custom_call.1} parent=1 // pred_region
      %92 = dma.done [#allocation6], 32
    $region41: #{tpu_custom_call.1} parent=1 // pred_fallthru
      _
    // Predicated region
    $region42: #{tpu_custom_call.1} parent=1 // pred_check
      _
    $region43: #{tpu_custom_call.1} parent=1 // pred_check_branch
      %94 = sbr.rel (0) target = $region45
    $region44: #{tpu_custom_call.1} parent=1 // pred_region
      %96 = dma.done [#allocation9], 4096
    $region45: #{tpu_custom_call.1} parent=1 // pred_fallthru
      _
    // Predicated region
    $region46: #{tpu_custom_call.1} parent=1 // pred_check
      _
    $region47: #{tpu_custom_call.1} parent=1 // pred_check_branch
      %98 = sbr.rel (0) target = $region49
    $region48: #{tpu_custom_call.1} parent=1 // pred_region
      %100 = dma.done [#allocation9], 2048
    $region49: #{tpu_custom_call.1} parent=1 // pred_fallthru
      _
    %v102 = vld [vmem:[#allocation2] sm:$0xff]
    %v103 = vpack.c.bf16 %v102, %v102
    %v104 = vld [vmem:[#allocation5] sm:$0xff]
    %v105 = vld [vmem:[#allocation5 + $0x8] sm:$0xff]
    %v106 = vld [vmem:[#allocation5 + $0x10] sm:$0xff]
    %v107 = vld [vmem:[#allocation7] sm:$0x3]
    %v109 = vperm.slane %v107, 0
    %v110 = vperm.slane %v107, 1
    %v116 = vunpack.c.l.b16 %v104
    %v117 = vunpack.c.h.b16 %v104
    %v118 = vunpack.c.l.b16 %v105
    %v119 = vunpack.c.h.b16 %v105
    %v120 = vunpack.c.l.b16 %v106
    %v121 = vunpack.c.h.b16 %v106
    %v122 = vpack.c.b16 %v118, %v116
    %v123 = vpack.c.b16 %v119, %v117
    %v124 = vpack.c.b16 %v120, %v120
    %v125 = vpack.c.b16 %v121, %v121
    %vm128 = vcmask 195584
    %v130 = vsel %vm128, %v103, 0
    %vm132 = vcmask 1043456
    %v134 = vsel %vm132, %v124, 0
    %v137 = vsel %vm132, %v125, 0
    %139 = vmatpush.bf16.msra.mxu0 0
    %140 = vmatpush.bf16.msra.mxu0 0
    %141 = vmatpush.bf16.msra.mxu0 0
    %142 = vmatpush.bf16.msra.mxu0 0
    %143 = vmatpush.bf16.msra.mxu0 0
    %144 = vmatpush.bf16.msra.mxu0 0
    %145 = vmatpush.bf16.msra.mxu0 %v134
    %146 = vmatpush.bf16.msra.mxu0 %v122
    %147 = vmatmul.bf16.gmra.mxu0 %v130
    %v148 = vpop.f32.mrf.mxu0
    %v149 = vadd.f32 %v109, %v148
    %v150 = vpop.f32.mrf.mxu0
    %151 = vdwg.mxu0
    %152 = vmatpush.bf16.msra.mxu0 0
    %153 = vmatpush.bf16.msra.mxu0 0
    %154 = vmatpush.bf16.msra.mxu0 0
    %155 = vmatpush.bf16.msra.mxu0 0
    %156 = vmatpush.bf16.msra.mxu0 0
    %157 = vmatpush.bf16.msra.mxu0 0
    %158 = vmatpush.bf16.msra.mxu0 %v137
    %159 = vmatpush.bf16.msra.mxu0 %v123
    %160 = vmatmul.bf16.gmra.mxu0 %v130
    %v161 = vpop.f32.mrf.mxu0
    %v162 = vadd.f32 %v110, %v161
    %v163 = vpop.f32.mrf.mxu0
    %164 = vdwg.mxu0
    %v165 = vmax.f32 %v149, 0.0
    %v166 = vmax.f32 %v162, 0.0
    %v167 = vpack.c.bf16 %v165, %v165
    %v168 = vpack.c.bf16 %v166, %v166
    %v169 = vld [vmem:[#allocation8] sm:$0xff]
    %v170 = vld [vmem:[#allocation8 + $0x8] sm:$0xff]
    %v171 = vld [vmem:[#allocation8 + $0x10] sm:$0xff]
    %v172 = vld [vmem:[#allocation8 + $0x18] sm:$0xff]
    %v173 = vld [vmem:[#allocation8 + $0x20] sm:$0xff]
    %v174 = vld [vmem:[#allocation8 + $0x28] sm:$0xff]
    %v175 = vld [vmem:[#allocation8 + $0x30] sm:$0xff]
    %v176 = vld [vmem:[#allocation8 + $0x38] sm:$0xff]
    %v177 = vld [vmem:[#allocation8 + $0x40] sm:$0xff]
    %v178 = vld [vmem:[#allocation8 + $0x48] sm:$0xff]
    %v179 = vld [vmem:[#allocation8 + $0x50] sm:$0xff]
    %v180 = vld [vmem:[#allocation8 + $0x58] sm:$0xff]
    %v181 = vld [vmem:[#allocation8 + $0x60] sm:$0xff]
    %v182 = vld [vmem:[#allocation8 + $0x68] sm:$0xff]
    %v183 = vld [vmem:[#allocation8 + $0x70] sm:$0xff]
    %v184 = vld [vmem:[#allocation8 + $0x78] sm:$0xff]
    %v185 = vld [vmem:[#allocation8 + $0x80] sm:$0xff]
    %v186 = vld [vmem:[#allocation8 + $0x88] sm:$0xff]
    %v187 = vld [vmem:[#allocation8 + $0x90] sm:$0xff]
    %v188 = vld [vmem:[#allocation8 + $0x98] sm:$0xff]
    %v189 = vld [vmem:[#allocation8 + $0xa0] sm:$0xff]
    %v190 = vld [vmem:[#allocation8 + $0xa8] sm:$0xff]
    %v191 = vld [vmem:[#allocation8 + $0xb0] sm:$0xff]
    %v192 = vld [vmem:[#allocation8 + $0xb8] sm:$0xff]
    %v193 = vld [vmem:[#allocation8 + $0xc0] sm:$0xff]
    %v194 = vld [vmem:[#allocation8 + $0xc8] sm:$0xff]
    %v195 = vld [vmem:[#allocation8 + $0xd0] sm:$0xff]
    %v196 = vld [vmem:[#allocation8 + $0xd8] sm:$0xff]
    %v197 = vld [vmem:[#allocation8 + $0xe0] sm:$0xff]
    %v198 = vld [vmem:[#allocation8 + $0xe8] sm:$0xff]
    %v199 = vld [vmem:[#allocation8 + $0xf0] sm:$0xff]
    %v200 = vld [vmem:[#allocation8 + $0xf8] sm:$0xff]
    %v201 = vld [vmem:[%s4] sm:$0x3]
    %v203 = vperm.slane %v201, 0
    %v204 = vperm.slane %v201, 1
    %v239 = vunpack.c.l.b16 %v169
    %v240 = vunpack.c.h.b16 %v169
    %v241 = vunpack.c.l.b16 %v170
    %v242 = vunpack.c.h.b16 %v170
    %v243 = vunpack.c.l.b16 %v171
    %v244 = vunpack.c.h.b16 %v171
    %v245 = vunpack.c.l.b16 %v172
    %v246 = vunpack.c.h.b16 %v172
    %v247 = vunpack.c.l.b16 %v173
    %v248 = vunpack.c.h.b16 %v173
    %v249 = vunpack.c.l.b16 %v174
    %v250 = vunpack.c.h.b16 %v174
    %v251 = vunpack.c.l.b16 %v175
    %v252 = vunpack.c.h.b16 %v175
    %v253 = vunpack.c.l.b16 %v176
    %v254 = vunpack.c.h.b16 %v176
    %v255 = vunpack.c.l.b16 %v177
    %v256 = vunpack.c.h.b16 %v177
    %v257 = vunpack.c.l.b16 %v178
    %v258 = vunpack.c.h.b16 %v178
    %v259 = vunpack.c.l.b16 %v179
    %v260 = vunpack.c.h.b16 %v179
    %v261 = vunpack.c.l.b16 %v180
    %v262 = vunpack.c.h.b16 %v180
    %v263 = vunpack.c.l.b16 %v181
    %v264 = vunpack.c.h.b16 %v181
    %v265 = vunpack.c.l.b16 %v182
    %v266 = vunpack.c.h.b16 %v182
    %v267 = vunpack.c.l.b16 %v183
    %v268 = vunpack.c.h.b16 %v183
    %v269 = vunpack.c.l.b16 %v184
    %v270 = vunpack.c.h.b16 %v184
    %v271 = vunpack.c.l.b16 %v185
    %v272 = vunpack.c.h.b16 %v185
    %v273 = vunpack.c.l.b16 %v186
    %v274 = vunpack.c.h.b16 %v186
    %v275 = vunpack.c.l.b16 %v187
    %v276 = vunpack.c.h.b16 %v187
    %v277 = vunpack.c.l.b16 %v188
    %v278 = vunpack.c.h.b16 %v188
    %v279 = vunpack.c.l.b16 %v189
    %v280 = vunpack.c.h.b16 %v189
    %v281 = vunpack.c.l.b16 %v190
    %v282 = vunpack.c.h.b16 %v190
    %v283 = vunpack.c.l.b16 %v191
    %v284 = vunpack.c.h.b16 %v191
    %v285 = vunpack.c.l.b16 %v192
    %v286 = vunpack.c.h.b16 %v192
    %v287 = vunpack.c.l.b16 %v193
    %v288 = vunpack.c.h.b16 %v193
    %v289 = vunpack.c.l.b16 %v194
    %v290 = vunpack.c.h.b16 %v194
    %v291 = vunpack.c.l.b16 %v195
    %v292 = vunpack.c.h.b16 %v195
    %v293 = vunpack.c.l.b16 %v196
    %v294 = vunpack.c.h.b16 %v196
    %v295 = vunpack.c.l.b16 %v197
    %v296 = vunpack.c.h.b16 %v197
    %v297 = vunpack.c.l.b16 %v198
    %v298 = vunpack.c.h.b16 %v198
    %v299 = vunpack.c.l.b16 %v199
    %v300 = vunpack.c.h.b16 %v199
    %v301 = vunpack.c.l.b16 %v200
    %v302 = vunpack.c.h.b16 %v200
    %v303 = vpack.c.b16 %v241, %v239
    %v304 = vpack.c.b16 %v242, %v240
    %v305 = vpack.c.b16 %v245, %v243
    %v306 = vpack.c.b16 %v246, %v244
    %v307 = vpack.c.b16 %v249, %v247
    %v308 = vpack.c.b16 %v250, %v248
    %v309 = vpack.c.b16 %v253, %v251
    %v310 = vpack.c.b16 %v254, %v252
    %v311 = vpack.c.b16 %v257, %v255
    %v312 = vpack.c.b16 %v258, %v256
    %v313 = vpack.c.b16 %v261, %v259
    %v314 = vpack.c.b16 %v262, %v260
    %v315 = vpack.c.b16 %v265, %v263
    %v316 = vpack.c.b16 %v266, %v264
    %v317 = vpack.c.b16 %v269, %v267
    %v318 = vpack.c.b16 %v270, %v268
    %v319 = vpack.c.b16 %v273, %v271
    %v320 = vpack.c.b16 %v274, %v272
    %v321 = vpack.c.b16 %v277, %v275
    %v322 = vpack.c.b16 %v278, %v276
    %v323 = vpack.c.b16 %v281, %v279
    %v324 = vpack.c.b16 %v282, %v280
    %v325 = vpack.c.b16 %v285, %v283
    %v326 = vpack.c.b16 %v286, %v284
    %v327 = vpack.c.b16 %v289, %v287
    %v328 = vpack.c.b16 %v290, %v288
    %v329 = vpack.c.b16 %v293, %v291
    %v330 = vpack.c.b16 %v294, %v292
    %v331 = vpack.c.b16 %v297, %v295
    %v332 = vpack.c.b16 %v298, %v296
    %v333 = vpack.c.b16 %v301, %v299
    %v334 = vpack.c.b16 %v302, %v300
    %367 = vmatpush.bf16.msra.mxu0 %v317
    %368 = vmatpush.bf16.msra.mxu0 %v315
    %369 = vmatpush.bf16.msra.mxu0 %v313
    %370 = vmatpush.bf16.msra.mxu0 %v311
    %371 = vmatpush.bf16.msra.mxu0 %v309
    %372 = vmatpush.bf16.msra.mxu0 %v307
    %373 = vmatpush.bf16.msra.mxu0 %v305
    %374 = vmatpush.bf16.msra.mxu0 %v303
    %375 = vmatmul.bf16.gmra.mxu0 %v167
    %v376 = vpop.f32.mrf.mxu0
    %v377 = vadd.f32 %v203, %v376
    %v378 = vpop.f32.mrf.mxu0
    %379 = vdwg.mxu0
    %380 = vmatpush.bf16.msra.mxu0 %v333
    %381 = vmatpush.bf16.msra.mxu0 %v331
    %382 = vmatpush.bf16.msra.mxu0 %v329
    %383 = vmatpush.bf16.msra.mxu0 %v327
    %384 = vmatpush.bf16.msra.mxu0 %v325
    %385 = vmatpush.bf16.msra.mxu0 %v323
    %386 = vmatpush.bf16.msra.mxu0 %v321
    %387 = vmatpush.bf16.msra.mxu0 %v319
    %388 = vmatmul.bf16.gmra.mxu0 %v168
    %v389 = vpop.f32.mrf.mxu0
    %v390 = vadd.f32 %v377, %v389
    %v391 = vpop.f32.mrf.mxu0
    %392 = vdwg.mxu0
    %393 = vmatpush.bf16.msra.mxu0 %v318
    %394 = vmatpush.bf16.msra.mxu0 %v316
    %395 = vmatpush.bf16.msra.mxu0 %v314
    %396 = vmatpush.bf16.msra.mxu0 %v312
    %397 = vmatpush.bf16.msra.mxu0 %v310
    %398 = vmatpush.bf16.msra.mxu0 %v308
    %399 = vmatpush.bf16.msra.mxu0 %v306
    %400 = vmatpush.bf16.msra.mxu0 %v304
    %401 = vmatmul.bf16.gmra.mxu0 %v167
    %v402 = vpop.f32.mrf.mxu0
    %v403 = vadd.f32 %v204, %v402
    %v404 = vpop.f32.mrf.mxu0
    %405 = vdwg.mxu0
    %406 = vmatpush.bf16.msra.mxu0 %v334
    %407 = vmatpush.bf16.msra.mxu0 %v332
    %408 = vmatpush.bf16.msra.mxu0 %v330
    %409 = vmatpush.bf16.msra.mxu0 %v328
    %410 = vmatpush.bf16.msra.mxu0 %v326
    %411 = vmatpush.bf16.msra.mxu0 %v324
    %412 = vmatpush.bf16.msra.mxu0 %v322
    %413 = vmatpush.bf16.msra.mxu0 %v320
    %414 = vmatmul.bf16.gmra.mxu0 %v168
    %v415 = vpop.f32.mrf.mxu0
    %v416 = vadd.f32 %v403, %v415
    %v417 = vpop.f32.mrf.mxu0
    %418 = vdwg.mxu0
    %v419 = vmax.f32 %v390, 0.0
    %v420 = vmax.f32 %v416, 0.0
    %v421 = vpack.c.bf16 %v419, %v419
    %v422 = vpack.c.bf16 %v420, %v420
    %v423 = vld [vmem:[#allocation10] sm:$0xf]
    %v424 = vld [vmem:[#allocation10 + $0x4] sm:$0xf]
    %v425 = vld [vmem:[#allocation10 + $0x8] sm:$0xf]
    %v426 = vld [vmem:[#allocation10 + $0xc] sm:$0xf]
    %v427 = vld [vmem:[#allocation10 + $0x10] sm:$0xf]
    %v428 = vld [vmem:[#allocation10 + $0x14] sm:$0xf]
    %v429 = vld [vmem:[#allocation10 + $0x18] sm:$0xf]
    %v430 = vld [vmem:[#allocation10 + $0x1c] sm:$0xf]
    %v431 = vld [vmem:[#allocation10 + $0x20] sm:$0xf]
    %v432 = vld [vmem:[#allocation10 + $0x24] sm:$0xf]
    %v433 = vld [vmem:[#allocation10 + $0x28] sm:$0xf]
    %v434 = vld [vmem:[#allocation10 + $0x2c] sm:$0xf]
    %v435 = vld [vmem:[#allocation10 + $0x30] sm:$0xf]
    %v436 = vld [vmem:[#allocation10 + $0x34] sm:$0xf]
    %v437 = vld [vmem:[#allocation10 + $0x38] sm:$0xf]
    %v438 = vld [vmem:[#allocation10 + $0x3c] sm:$0xf]
    %v439 = vld [vmem:[#allocation10 + $0x40] sm:$0xf]
    %v440 = vld [vmem:[#allocation10 + $0x44] sm:$0xf]
    %v441 = vld [vmem:[#allocation10 + $0x48] sm:$0xf]
    %v442 = vld [vmem:[#allocation10 + $0x4c] sm:$0xf]
    %v443 = vld [vmem:[#allocation10 + $0x50] sm:$0xf]
    %v444 = vld [vmem:[#allocation10 + $0x54] sm:$0xf]
    %v445 = vld [vmem:[#allocation10 + $0x58] sm:$0xf]
    %v446 = vld [vmem:[#allocation10 + $0x5c] sm:$0xf]
    %v447 = vld [vmem:[#allocation10 + $0x60] sm:$0xf]
    %v448 = vld [vmem:[#allocation10 + $0x64] sm:$0xf]
    %v449 = vld [vmem:[#allocation10 + $0x68] sm:$0xf]
    %v450 = vld [vmem:[#allocation10 + $0x6c] sm:$0xf]
    %v451 = vld [vmem:[#allocation10 + $0x70] sm:$0xf]
    %v452 = vld [vmem:[#allocation10 + $0x74] sm:$0xf]
    %v453 = vld [vmem:[#allocation10 + $0x78] sm:$0xf]
    %v454 = vld [vmem:[#allocation10 + $0x7c] sm:$0xf]
    %v455 = vld [vmem:[%s6] sm:$0x1]
    %v457 = vperm.slane %v455, 0
    %v491 = vunpack.c.l.b16 %v423
    %v492 = vunpack.c.l.b16 %v424
    %v493 = vunpack.c.l.b16 %v425
    %v494 = vunpack.c.l.b16 %v426
    %v495 = vunpack.c.l.b16 %v427
    %v496 = vunpack.c.l.b16 %v428
    %v497 = vunpack.c.l.b16 %v429
    %v498 = vunpack.c.l.b16 %v430
    %v499 = vunpack.c.l.b16 %v431
    %v500 = vunpack.c.l.b16 %v432
    %v501 = vunpack.c.l.b16 %v433
    %v502 = vunpack.c.l.b16 %v434
    %v503 = vunpack.c.l.b16 %v435
    %v504 = vunpack.c.l.b16 %v436
    %v505 = vunpack.c.l.b16 %v437
    %v506 = vunpack.c.l.b16 %v438
    %v507 = vunpack.c.l.b16 %v439
    %v508 = vunpack.c.l.b16 %v440
    %v509 = vunpack.c.l.b16 %v441
    %v510 = vunpack.c.l.b16 %v442
    %v511 = vunpack.c.l.b16 %v443
    %v512 = vunpack.c.l.b16 %v444
    %v513 = vunpack.c.l.b16 %v445
    %v514 = vunpack.c.l.b16 %v446
    %v515 = vunpack.c.l.b16 %v447
    %v516 = vunpack.c.l.b16 %v448
    %v517 = vunpack.c.l.b16 %v449
    %v518 = vunpack.c.l.b16 %v450
    %v519 = vunpack.c.l.b16 %v451
    %v520 = vunpack.c.l.b16 %v452
    %v521 = vunpack.c.l.b16 %v453
    %v522 = vunpack.c.l.b16 %v454
    %v523 = vpack.c.b16 %v492, %v491
    %v524 = vpack.c.b16 %v494, %v493
    %v525 = vpack.c.b16 %v496, %v495
    %v526 = vpack.c.b16 %v498, %v497
    %v527 = vpack.c.b16 %v500, %v499
    %v528 = vpack.c.b16 %v502, %v501
    %v529 = vpack.c.b16 %v504, %v503
    %v530 = vpack.c.b16 %v506, %v505
    %v531 = vpack.c.b16 %v508, %v507
    %v532 = vpack.c.b16 %v510, %v509
    %v533 = vpack.c.b16 %v512, %v511
    %v534 = vpack.c.b16 %v514, %v513
    %v535 = vpack.c.b16 %v516, %v515
    %v536 = vpack.c.b16 %v518, %v517
    %v537 = vpack.c.b16 %v520, %v519
    %v538 = vpack.c.b16 %v522, %v521
    %555 = vmatpush.bf16.msra.mxu0 %v530
    %556 = vmatpush.bf16.msra.mxu0 %v529
    %557 = vmatpush.bf16.msra.mxu0 %v528
    %558 = vmatpush.bf16.msra.mxu0 %v527
    %559 = vmatpush.bf16.msra.mxu0 %v526
    %560 = vmatpush.bf16.msra.mxu0 %v525
    %561 = vmatpush.bf16.msra.mxu0 %v524
    %562 = vmatpush.bf16.msra.mxu0 %v523
    %563 = vmatmul.bf16.gmra.mxu0 %v421
    %v564 = vpop.f32.mrf.mxu0
    %v565 = vadd.f32 %v457, %v564
    %v566 = vpop.f32.mrf.mxu0
    %567 = vdwg.mxu0
    %568 = vmatpush.bf16.msra.mxu0 %v538
    %569 = vmatpush.bf16.msra.mxu0 %v537
    %570 = vmatpush.bf16.msra.mxu0 %v536
    %571 = vmatpush.bf16.msra.mxu0 %v535
    %572 = vmatpush.bf16.msra.mxu0 %v534
    %573 = vmatpush.bf16.msra.mxu0 %v533
    %574 = vmatpush.bf16.msra.mxu0 %v532
    %575 = vmatpush.bf16.msra.mxu0 %v531
    %576 = vmatmul.bf16.gmra.mxu0 %v422
    %v577 = vpop.f32.mrf.mxu0
    %v578 = vadd.f32 %v565, %v577
    %v579 = vpop.f32.mrf.mxu0
    %580 = vdwg.mxu0
    %581 = vst [vmem:[#allocation11] sm:$0xff] %v578
    // Predicated region
    $region50: #{tpu_custom_call.1} parent=1 // pred_check
      _
    $region51: #{tpu_custom_call.1} parent=1 // pred_check_branch
      %583 = sbr.rel (0) target = $region53
    $region52: #{tpu_custom_call.1} parent=1 // pred_region
      %585 = vsyncadd [#allocation4], 0
      %s587 = sshll.u32 [#allocation11], 4
      %s588 = int_to_ptr.vmem [resolvable:$true] %s587
      %s589 = sshll.u32 %s7, 4
      %s590 = int_to_ptr.hbm [resolvable:$true] %s589
      %592 = dma.vmem_to_hbm [thread:$0]  %s588, 128, %s590, [#allocation4]
    $region53: #{tpu_custom_call.1} parent=1 // pred_fallthru
      _
    // Predicated region
    $region54: #{tpu_custom_call.1} parent=1 // pred_check
      _
    $region55: #{tpu_custom_call.1} parent=1 // pred_check_branch
      %594 = sbr.rel (0) target = $region57
    $region56: #{tpu_custom_call.1} parent=1 // pred_region
      %596 = dma.done [#allocation4], 128
    $region57: #{tpu_custom_call.1} parent=1 // pred_fallthru
      _
    %597 = vsyncpa [#allocation3], 1
    %598 = vsyncpa [#allocation6], 1
    %599 = vsyncpa [#allocation9], 1
    %600 = vsyncpa [#allocation4], 1

</llo_original>
